<compile_context>
chip_gen: v7x
topology: tpu7x:2x2x1
jax: 0.10.0
libtpu: 0.0.40
codegen_flags: <defaults>
</compile_context>

<pallas_src>
import jax
import jax.numpy as jnp
from jax.experimental import pallas as pl
from jax.experimental.pallas import tpu as pltpu


# --------------------------------------------------------------------------- #
# Kernel
# --------------------------------------------------------------------------- #
def _decoder_kernel(tok_ref,                        # VMEM [B,1] int32
                    table_ref,                      # VMEM [V,E]  bf16
                    h_ref, ctx_ref,                 # VMEM [1,B,H] f32
                    w_ie_ref, w_ic_ref, b_i_ref,    # [E,3H] bf16, [H,3H] bf16, [1,3H] f32
                    w_hh_ref, b_h_ref,              # [H,3H] bf16, [1,3H] f32
                    w_fe_ref, w_fh_ref, w_fx_ref,   # [E,O], [H,O], [H,O]  bf16
                    b_f_ref,                        # [1,O] f32
                    pred_ref, h_out_ref):           # outputs f32: [B,O], [1,B,H]
    bsz = tok_ref.shape[0]
    vocab = table_ref.shape[0]
    hdim = h_ref.shape[2]

    # ---- embedding lookup as a one-hot matmul (MXU is idle here, so ~free) ----
    iota = jax.lax.broadcasted_iota(jnp.int32, (bsz, vocab), 1)
    one_hot = jnp.where(iota == tok_ref[...], 1.0, 0.0).astype(jnp.bfloat16)   # [B,V]
    emb = jnp.dot(one_hot, table_ref[...],
                  preferred_element_type=jnp.float32).astype(jnp.bfloat16)      # [B,E] exact rows
    # dropout: eval-mode identity.

    h = h_ref[0]                                    # [B,H] f32 (kept f32 for the state update)
    ctx = ctx_ref[0]
    h_bf = h.astype(jnp.bfloat16)
    ctx_bf = ctx.astype(jnp.bfloat16)

    # ---- GRU gates, concat-free: gi = [emb | ctx] @ W_ih expressed as 2 matmuls ----
    gi = (jnp.dot(emb, w_ie_ref[...], preferred_element_type=jnp.float32)
          + jnp.dot(ctx_bf, w_ic_ref[...], preferred_element_type=jnp.float32)
          + b_i_ref[...])                           # [B, 3H]
    gh = (jnp.dot(h_bf, w_hh_ref[...], preferred_element_type=jnp.float32)
          + b_h_ref[...])                           # [B, 3H]

    # Gates packed contiguously (3H = 96 lanes, one vreg); 32-lane slices are cheap here.
    r = jax.nn.sigmoid(gi[:, :hdim] + gh[:, :hdim])
    z = jax.nn.sigmoid(gi[:, hdim:2 * hdim] + gh[:, hdim:2 * hdim])
    n = jnp.tanh(gi[:, 2 * hdim:] + r * gh[:, 2 * hdim:])
    h_new = (1.0 - z) * n + z * h                   # [B,H] f32
    h_out_ref[0] = h_new

    # ---- fc_out, concat-free: pred = [emb | h_new | ctx] @ W_fc as 3 matmuls ----
    pred_ref[...] = (jnp.dot(emb, w_fe_ref[...], preferred_element_type=jnp.float32)
                     + jnp.dot(h_new.astype(jnp.bfloat16), w_fh_ref[...],
                               preferred_element_type=jnp.float32)
                     + jnp.dot(ctx_bf, w_fx_ref[...], preferred_element_type=jnp.float32)
                     + b_f_ref[...])


# --------------------------------------------------------------------------- #
# Host-side weight preparation: split per source, cast to bf16 (no padding)
# --------------------------------------------------------------------------- #
def prep_kernel_params(params, emb_dim, hid_dim, output_dim):
    e = emb_dim
    w_ih, w_hh, w_fc = params["w_ih"], params["w_hh"], params["w_fc"]
    return {
        "table": params["embedding"].astype(jnp.bfloat16),      # [V, E]
        # GRU input weights split by source (emb / context); gate order r,z,n packed.
        "w_ie": w_ih[:e].astype(jnp.bfloat16),                   # [E, 3H]
        "w_ic": w_ih[e:].astype(jnp.bfloat16),                   # [H, 3H]
        "b_i": params["b_ih"][None, :].astype(jnp.float32),      # [1, 3H]
        "w_hh": w_hh.astype(jnp.bfloat16),                       # [H, 3H]
        "b_h": params["b_hh"][None, :].astype(jnp.float32),      # [1, 3H]
        # fc_out split by source (emb / h_new / context).
        "w_fe": w_fc[:e].astype(jnp.bfloat16),                   # [E, O]
        "w_fh": w_fc[e:e + hid_dim].astype(jnp.bfloat16),        # [H, O]
        "w_fx": w_fc[e + hid_dim:].astype(jnp.bfloat16),         # [H, O]
        "b_f": params["b_fc"][None, :].astype(jnp.float32),      # [1, O]
    }


# --------------------------------------------------------------------------- #
# Wrapper (single dispatch: no host-side padding / slicing)
# --------------------------------------------------------------------------- #
def _decoder_forward(token_ids, hidden, context, kparams):
    """token_ids: [B] int, hidden: [1,B,H], context: [1,B,H] -> (pred [B,O], hidden [1,B,H])."""
    B = token_ids.shape[0]
    H = hidden.shape[2]
    O = kparams["b_f"].shape[1]

    tok = token_ids.astype(jnp.int32).reshape(B, 1)
    hidden = hidden.astype(jnp.float32)
    context = context.astype(jnp.float32)

    vmem = pl.BlockSpec(memory_space=pltpu.MemorySpace.VMEM)   # whole array, VMEM resident

    pred, h_new = pl.pallas_call(
        _decoder_kernel,
        out_shape=(jax.ShapeDtypeStruct((B, O), jnp.float32),
                   jax.ShapeDtypeStruct((1, B, H), jnp.float32)),
        in_specs=[vmem] * 13,
        out_specs=(vmem, vmem),
        input_output_aliases={2: 1},       # hidden (input idx 2) updated in place -> output idx 1
    )(tok, kparams["table"], hidden, context,
      kparams["w_ie"], kparams["w_ic"], kparams["b_i"],
      kparams["w_hh"], kparams["b_h"],
      kparams["w_fe"], kparams["w_fh"], kparams["w_fx"], kparams["b_f"])
    return pred, h_new


decoder_forward = jax.jit(_decoder_forward)


# --------------------------------------------------------------------------- #
# Params + pure-JAX references
# --------------------------------------------------------------------------- #
def make_params(key, output_dim, emb_dim, hid_dim):
    ks = jax.random.split(key, 7)
    scale = 0.1
    return {
        "embedding": scale * jax.random.normal(ks[0], (output_dim, emb_dim), jnp.float32),
        # GRU weights stored transposed vs PyTorch: [in, 3H] / [H, 3H], gate order r,z,n
        "w_ih": scale * jax.random.normal(ks[1], (emb_dim + hid_dim, 3 * hid_dim), jnp.float32),
        "b_ih": scale * jax.random.normal(ks[2], (3 * hid_dim,), jnp.float32),
        "w_hh": scale * jax.random.normal(ks[3], (hid_dim, 3 * hid_dim), jnp.float32),
        "b_hh": scale * jax.random.normal(ks[4], (3 * hid_dim,), jnp.float32),
        # fc_out transposed vs PyTorch: [E+2H, O]
        "w_fc": scale * jax.random.normal(ks[5], (emb_dim + 2 * hid_dim, output_dim), jnp.float32),
        "b_fc": scale * jax.random.normal(ks[6], (output_dim,), jnp.float32),
    }


def reference_forward(token_ids, hidden, context, params, mirror_bf16=True):
    """Pure-JAX reference (PyTorch Decoder forward, eval mode).

    mirror_bf16=True rounds matmul operands through bf16 to mirror the kernel's
    bf16 weight/activation storage (tight-tolerance check); mirror_bf16=False is
    the true f32 model (looser tolerance)."""
    if mirror_bf16:
        q = lambda x: x.astype(jnp.bfloat16).astype(jnp.float32)
    else:
        q = lambda x: x
    emb = q(jnp.take(params["embedding"], token_ids, axis=0))     # [B, E]
    h = hidden[0].astype(jnp.float32)
    ctx = context[0].astype(jnp.float32)
    H = h.shape[1]

    x = jnp.concatenate([emb, q(ctx)], axis=1)
    gi = x @ q(params["w_ih"]) + params["b_ih"]
    gh = q(h) @ q(params["w_hh"]) + params["b_hh"]
    r = jax.nn.sigmoid(gi[:, :H] + gh[:, :H])
    z = jax.nn.sigmoid(gi[:, H:2 * H] + gh[:, H:2 * H])
    n = jnp.tanh(gi[:, 2 * H:] + r * gh[:, 2 * H:])
    h_new = (1.0 - z) * n + z * h
    out = jnp.concatenate([emb, q(h_new), q(ctx)], axis=1)
    pred = out @ q(params["w_fc"]) + params["b_fc"]
    return pred, h_new[None]


if __name__ == "__main__":
    OUTPUT_DIM = 64   # vocab size
    EMB_DIM = 32
    HID_DIM = 32
    BATCH = 2

    key = jax.random.PRNGKey(0)
    k_par, k_tok, k_hid, k_ctx = jax.random.split(key, 4)

    params = make_params(k_par, OUTPUT_DIM, EMB_DIM, HID_DIM)
    kparams = prep_kernel_params(params, EMB_DIM, HID_DIM, OUTPUT_DIM)

    token_ids = jax.random.randint(k_tok, (BATCH,), 0, OUTPUT_DIM, dtype=jnp.int32)
    hidden = jax.random.normal(k_hid, (1, BATCH, HID_DIM), jnp.float32)
    context = jax.random.normal(k_ctx, (1, BATCH, HID_DIM), jnp.float32)

    pred, h_new = decoder_forward(token_ids, hidden, context, kparams)
    jax.block_until_ready((pred, h_new))

    # Tight check vs bf16-mirrored reference, looser check vs true f32 model.
    pred_bf, h_bf = reference_forward(token_ids, hidden, context, params, mirror_bf16=True)
    pred_f32, h_f32 = reference_forward(token_ids, hidden, context, params, mirror_bf16=False)

    assert pred.shape == (BATCH, OUTPUT_DIM)
    assert h_new.shape == (1, BATCH, HID_DIM)
    assert jnp.allclose(pred, pred_bf, rtol=5e-3, atol=5e-3), float(jnp.max(jnp.abs(pred - pred_bf)))
    assert jnp.allclose(h_new, h_bf, rtol=5e-3, atol=5e-3), float(jnp.max(jnp.abs(h_new - h_bf)))
    assert jnp.allclose(pred, pred_f32, rtol=3e-2, atol=3e-2), float(jnp.max(jnp.abs(pred - pred_f32)))
    assert jnp.allclose(h_new, h_f32, rtol=3e-2, atol=3e-2), float(jnp.max(jnp.abs(h_new - h_f32)))

    print("KERNEL_OK")
</pallas_src>

<mosaic_0001>
module attributes {stable_mosaic.version = 11 : i64} {
  func.func @_decoder_kernel(%arg0: memref<2x1xi32, #tpu.memory_space<vmem>>, %arg1: memref<64x32xbf16, #tpu.memory_space<vmem>>, %arg2: memref<1x2x32xf32, #tpu.memory_space<vmem>>, %arg3: memref<1x2x32xf32, #tpu.memory_space<vmem>>, %arg4: memref<32x96xbf16, #tpu.memory_space<vmem>>, %arg5: memref<32x96xbf16, #tpu.memory_space<vmem>>, %arg6: memref<1x96xf32, #tpu.memory_space<vmem>>, %arg7: memref<32x96xbf16, #tpu.memory_space<vmem>>, %arg8: memref<1x96xf32, #tpu.memory_space<vmem>>, %arg9: memref<32x64xbf16, #tpu.memory_space<vmem>>, %arg10: memref<32x64xbf16, #tpu.memory_space<vmem>>, %arg11: memref<32x64xbf16, #tpu.memory_space<vmem>>, %arg12: memref<1x64xf32, #tpu.memory_space<vmem>>, %arg13: memref<2x64xf32, #tpu.memory_space<vmem>>, %arg14: memref<1x2x32xf32, #tpu.memory_space<vmem>>) attributes {dimension_semantics = [], scalar_prefetch = 0 : i64, scratch_operands = 0 : i64, tpu.core_type = #tpu.core_type<tc>} {
    %0 = tpu.iota {dimensions = array<i32: 1>} : vector<2x64xi32>
    %c0 = arith.constant 0 : index
    %c0_0 = arith.constant 0 : index
    %1 = vector.load %arg0[%c0, %c0_0] : memref<2x1xi32, #tpu.memory_space<vmem>>, vector<2x1xi32>
    %2 = vector.broadcast %1 : vector<2x1xi32> to vector<2x64xi32>
    %3 = arith.cmpi eq, %0, %2 : vector<2x64xi32>
    %cst = arith.constant 1.000000e+00 : f32
    %cst_1 = arith.constant 0.000000e+00 : f32
    %4 = vector.broadcast %cst : f32 to vector<2x64xf32>
    %5 = vector.broadcast %cst_1 : f32 to vector<2x64xf32>
    %6 = arith.select %3, %4, %5 : vector<2x64xi1>, vector<2x64xf32>
    %7 = arith.truncf %6 : vector<2x64xf32> to vector<2x64xbf16>
    %c0_2 = arith.constant 0 : index
    %c0_3 = arith.constant 0 : index
    %8 = vector.load %arg1[%c0_2, %c0_3] : memref<64x32xbf16, #tpu.memory_space<vmem>>, vector<64x32xbf16>
    %cst_4 = arith.constant dense<0.000000e+00> : vector<2x32xf32>
    %9 = tpu.matmul %7, %8, %cst_4 {dimension_numbers = #tpu.dot_dimension_numbers<[1], [0], [0], [1], [0, 0, 1, 1], [], []>} : vector<2x64xbf16>, vector<64x32xbf16>, vector<2x32xf32> -> vector<2x32xf32>
    %10 = arith.truncf %9 : vector<2x32xf32> to vector<2x32xbf16>
    %c0_5 = arith.constant 0 : index
    %c0_6 = arith.constant 0 : index
    %c0_7 = arith.constant 0 : index
    %11 = vector.load %arg2[%c0_5, %c0_6, %c0_7] : memref<1x2x32xf32, #tpu.memory_space<vmem>>, vector<1x2x32xf32>
    %12 = vector.shape_cast %11 : vector<1x2x32xf32> to vector<2x32xf32>
    %c0_8 = arith.constant 0 : index
    %c0_9 = arith.constant 0 : index
    %c0_10 = arith.constant 0 : index
    %13 = vector.load %arg3[%c0_8, %c0_9, %c0_10] : memref<1x2x32xf32, #tpu.memory_space<vmem>>, vector<1x2x32xf32>
    %14 = vector.shape_cast %13 : vector<1x2x32xf32> to vector<2x32xf32>
    %15 = arith.truncf %12 : vector<2x32xf32> to vector<2x32xbf16>
    %16 = arith.truncf %14 : vector<2x32xf32> to vector<2x32xbf16>
    %c0_11 = arith.constant 0 : index
    %c0_12 = arith.constant 0 : index
    %17 = vector.load %arg4[%c0_11, %c0_12] : memref<32x96xbf16, #tpu.memory_space<vmem>>, vector<32x96xbf16>
    %cst_13 = arith.constant dense<0.000000e+00> : vector<2x96xf32>
    %18 = tpu.matmul %10, %17, %cst_13 {dimension_numbers = #tpu.dot_dimension_numbers<[1], [0], [0], [1], [0, 0, 1, 1], [], []>} : vector<2x32xbf16>, vector<32x96xbf16>, vector<2x96xf32> -> vector<2x96xf32>
    %c0_14 = arith.constant 0 : index
    %c0_15 = arith.constant 0 : index
    %19 = vector.load %arg5[%c0_14, %c0_15] : memref<32x96xbf16, #tpu.memory_space<vmem>>, vector<32x96xbf16>
    %cst_16 = arith.constant dense<0.000000e+00> : vector<2x96xf32>
    %20 = tpu.matmul %16, %19, %cst_16 {dimension_numbers = #tpu.dot_dimension_numbers<[1], [0], [0], [1], [0, 0, 1, 1], [], []>} : vector<2x32xbf16>, vector<32x96xbf16>, vector<2x96xf32> -> vector<2x96xf32>
    %21 = arith.addf %18, %20 : vector<2x96xf32>
    %c0_17 = arith.constant 0 : index
    %c0_18 = arith.constant 0 : index
    %22 = vector.load %arg6[%c0_17, %c0_18] : memref<1x96xf32, #tpu.memory_space<vmem>>, vector<1x96xf32>
    %23 = vector.broadcast %22 : vector<1x96xf32> to vector<2x96xf32>
    %24 = arith.addf %21, %23 : vector<2x96xf32>
    %c0_19 = arith.constant 0 : index
    %c0_20 = arith.constant 0 : index
    %25 = vector.load %arg7[%c0_19, %c0_20] : memref<32x96xbf16, #tpu.memory_space<vmem>>, vector<32x96xbf16>
    %cst_21 = arith.constant dense<0.000000e+00> : vector<2x96xf32>
    %26 = tpu.matmul %15, %25, %cst_21 {dimension_numbers = #tpu.dot_dimension_numbers<[1], [0], [0], [1], [0, 0, 1, 1], [], []>} : vector<2x32xbf16>, vector<32x96xbf16>, vector<2x96xf32> -> vector<2x96xf32>
    %c0_22 = arith.constant 0 : index
    %c0_23 = arith.constant 0 : index
    %27 = vector.load %arg8[%c0_22, %c0_23] : memref<1x96xf32, #tpu.memory_space<vmem>>, vector<1x96xf32>
    %28 = vector.broadcast %27 : vector<1x96xf32> to vector<2x96xf32>
    %29 = arith.addf %26, %28 : vector<2x96xf32>
    %30 = vector.extract_strided_slice %24 {offsets = [0, 0], sizes = [2, 32], strides = [1, 1]} : vector<2x96xf32> to vector<2x32xf32>
    %31 = vector.extract_strided_slice %29 {offsets = [0, 0], sizes = [2, 32], strides = [1, 1]} : vector<2x96xf32> to vector<2x32xf32>
    %32 = arith.addf %30, %31 : vector<2x32xf32>
    %33 = arith.negf %32 : vector<2x32xf32>
    %34 = math.exp %33 : vector<2x32xf32>
    %cst_24 = arith.constant 1.000000e+00 : f32
    %35 = vector.broadcast %cst_24 : f32 to vector<2x32xf32>
    %36 = arith.addf %35, %34 : vector<2x32xf32>
    %37 = arith.divf %35, %36 : vector<2x32xf32>
    %38 = vector.extract_strided_slice %24 {offsets = [0, 32], sizes = [2, 32], strides = [1, 1]} : vector<2x96xf32> to vector<2x32xf32>
    %39 = vector.extract_strided_slice %29 {offsets = [0, 32], sizes = [2, 32], strides = [1, 1]} : vector<2x96xf32> to vector<2x32xf32>
    %40 = arith.addf %38, %39 : vector<2x32xf32>
    %41 = arith.negf %40 : vector<2x32xf32>
    %42 = math.exp %41 : vector<2x32xf32>
    %cst_25 = arith.constant 1.000000e+00 : f32
    %43 = vector.broadcast %cst_25 : f32 to vector<2x32xf32>
    %44 = arith.addf %43, %42 : vector<2x32xf32>
    %45 = arith.divf %43, %44 : vector<2x32xf32>
    %46 = vector.extract_strided_slice %24 {offsets = [0, 64], sizes = [2, 32], strides = [1, 1]} : vector<2x96xf32> to vector<2x32xf32>
    %47 = vector.extract_strided_slice %29 {offsets = [0, 64], sizes = [2, 32], strides = [1, 1]} : vector<2x96xf32> to vector<2x32xf32>
    %48 = arith.mulf %37, %47 : vector<2x32xf32>
    %49 = arith.addf %46, %48 : vector<2x32xf32>
    %50 = math.tanh %49 : vector<2x32xf32>
    %cst_26 = arith.constant 1.000000e+00 : f32
    %51 = vector.broadcast %cst_26 : f32 to vector<2x32xf32>
    %52 = arith.subf %51, %45 : vector<2x32xf32>
    %53 = arith.mulf %52, %50 : vector<2x32xf32>
    %54 = arith.mulf %45, %12 : vector<2x32xf32>
    %55 = arith.addf %53, %54 : vector<2x32xf32>
    %c0_27 = arith.constant 0 : index
    %c0_28 = arith.constant 0 : index
    %c0_29 = arith.constant 0 : index
    %56 = vector.load %arg14[%c0_27, %c0_28, %c0_29] : memref<1x2x32xf32, #tpu.memory_space<vmem>>, vector<1x2x32xf32>
    %57 = vector.shape_cast %56 : vector<1x2x32xf32> to vector<2x32xf32>
    %58 = vector.shape_cast %55 : vector<2x32xf32> to vector<1x2x32xf32>
    tpu.vector_store %arg14[%c0_27, %c0_28, %c0_29], %58 {strides = array<i32>} : memref<1x2x32xf32, #tpu.memory_space<vmem>>, vector<1x2x32xf32>,
    %c0_30 = arith.constant 0 : index
    %c0_31 = arith.constant 0 : index
    %59 = vector.load %arg9[%c0_30, %c0_31] : memref<32x64xbf16, #tpu.memory_space<vmem>>, vector<32x64xbf16>
    %cst_32 = arith.constant dense<0.000000e+00> : vector<2x64xf32>
    %60 = tpu.matmul %10, %59, %cst_32 {dimension_numbers = #tpu.dot_dimension_numbers<[1], [0], [0], [1], [0, 0, 1, 1], [], []>} : vector<2x32xbf16>, vector<32x64xbf16>, vector<2x64xf32> -> vector<2x64xf32>
    %61 = arith.truncf %55 : vector<2x32xf32> to vector<2x32xbf16>
    %c0_33 = arith.constant 0 : index
    %c0_34 = arith.constant 0 : index
    %62 = vector.load %arg10[%c0_33, %c0_34] : memref<32x64xbf16, #tpu.memory_space<vmem>>, vector<32x64xbf16>
    %cst_35 = arith.constant dense<0.000000e+00> : vector<2x64xf32>
    %63 = tpu.matmul %61, %62, %cst_35 {dimension_numbers = #tpu.dot_dimension_numbers<[1], [0], [0], [1], [0, 0, 1, 1], [], []>} : vector<2x32xbf16>, vector<32x64xbf16>, vector<2x64xf32> -> vector<2x64xf32>
    %64 = arith.addf %60, %63 : vector<2x64xf32>
    %c0_36 = arith.constant 0 : index
    %c0_37 = arith.constant 0 : index
    %65 = vector.load %arg11[%c0_36, %c0_37] : memref<32x64xbf16, #tpu.memory_space<vmem>>, vector<32x64xbf16>
    %cst_38 = arith.constant dense<0.000000e+00> : vector<2x64xf32>
    %66 = tpu.matmul %16, %65, %cst_38 {dimension_numbers = #tpu.dot_dimension_numbers<[1], [0], [0], [1], [0, 0, 1, 1], [], []>} : vector<2x32xbf16>, vector<32x64xbf16>, vector<2x64xf32> -> vector<2x64xf32>
    %67 = arith.addf %64, %66 : vector<2x64xf32>
    %c0_39 = arith.constant 0 : index
    %c0_40 = arith.constant 0 : index
    %68 = vector.load %arg12[%c0_39, %c0_40] : memref<1x64xf32, #tpu.memory_space<vmem>>, vector<1x64xf32>
    %69 = vector.broadcast %68 : vector<1x64xf32> to vector<2x64xf32>
    %70 = arith.addf %67, %69 : vector<2x64xf32>
    %c0_41 = arith.constant 0 : index
    %c0_42 = arith.constant 0 : index
    %71 = vector.load %arg13[%c0_41, %c0_42] : memref<2x64xf32, #tpu.memory_space<vmem>>, vector<2x64xf32>
    tpu.vector_store %arg13[%c0_41, %c0_42], %70 {strides = array<i32>} : memref<2x64xf32, #tpu.memory_space<vmem>>, vector<2x64xf32>,
    return
  }
}

</mosaic_0001>

<llo_original>
// kernel: _decoder_forward.1
$region0: #{_decoder_forward.1}
  #allocation0 [shape = 'u32[]', space=smem, size = 0x4, offset = 0x4, fixed_abs, tag = 'smem constant byte address 0x4 - core index']
  #allocation1 [shape = 'u32[144,128]{1,0:T(1,128)}', space=vmem, size = 0x12000, scoped, tag = 'internal scratch']
  %s0 = inlined_call_operand.vmem [shape: s32[2,1], index: 0, kind: input, shape index: {}]
  %s1 = inlined_call_operand.vmem [shape: bf16[64,32], index: 1, kind: input, shape index: {}]
  %s2 = inlined_call_operand.hbm [shape: f32[1,2,32], index: 2, kind: input, shape index: {}, may-alias: {2,14}]
  %s3 = inlined_call_operand.vmem [shape: f32[1,2,32], index: 3, kind: input, shape index: {}]
  %s4 = inlined_call_operand.vmem [shape: bf16[32,96], index: 4, kind: input, shape index: {}]
  %s5 = inlined_call_operand.vmem [shape: bf16[32,96], index: 5, kind: input, shape index: {}]
  %s6 = inlined_call_operand.vmem [shape: f32[1,96], index: 6, kind: input, shape index: {}]
  %s7 = inlined_call_operand.vmem [shape: bf16[32,96], index: 7, kind: input, shape index: {}]
  %s8 = inlined_call_operand.vmem [shape: f32[1,96], index: 8, kind: input, shape index: {}]
  %s9 = inlined_call_operand.hbm [shape: bf16[32,64], index: 9, kind: input, shape index: {}]
  %s10 = inlined_call_operand.hbm [shape: bf16[32,64], index: 10, kind: input, shape index: {}]
  %s11 = inlined_call_operand.hbm [shape: bf16[32,64], index: 11, kind: input, shape index: {}]
  %s12 = inlined_call_operand.vmem [shape: f32[1,64], index: 12, kind: input, shape index: {}]
  %s13 = inlined_call_operand.hbm [shape: f32[2,64], index: 13, kind: output, shape index: {0}]
  %s14 = inlined_call_operand.hbm [shape: f32[1,2,32], index: 14, kind: output, shape index: {1}, may-alias: {2,14}]
  %15 = xla_tuple %s13, %s14
  %s16 = sld [smem:[#allocation0]]
  $region86: #{_decoder_forward.1} parent=0
    _
  %s18 = ssub.s32 1, %s16
  %s19 = scalar_select 0, %s18, %s16
  $region1: #{_decoder_forward.1} parent=0
    #allocation2 [shape = 'u8[1024]{0}', space=vmem, size = 0x400, scoped, tag = 'input window, operand 2, single buffered']
    #allocation3 [shape = 's32[1]{0}', space=sflag, size = 0x4, scoped, tag = 'scoped memory for _decoder_forward.1']
    #allocation4 [shape = 's32[1]{0}', space=sflag, size = 0x4, scoped, tag = 'scoped memory for _decoder_forward.1']
    #allocation5 [shape = 'u8[8192]{0}', space=vmem, size = 0x2000, scoped, tag = 'input window, operand 9, single buffered']
    #allocation6 [shape = 's32[1]{0}', space=sflag, size = 0x4, scoped, tag = 'scoped memory for _decoder_forward.1']
    #allocation7 [shape = 'u8[8192]{0}', space=vmem, size = 0x2000, scoped, tag = 'input window, operand 10, single buffered']
    #allocation8 [shape = 'u8[8192]{0}', space=vmem, size = 0x2000, scoped, tag = 'input window, operand 11, single buffered']
    #allocation9 [shape = 's32[1]{0}', space=sflag, size = 0x4, scoped, tag = 'scoped memory for _decoder_forward.1']
    #allocation10 [shape = 'u8[1024]{0}', space=vmem, size = 0x400, scoped, tag = 'output window, operand 0, single buffered']
    #allocation11 [shape = 'u8[1024]{0}', space=vmem, size = 0x400, scoped, tag = 'output window, operand 1, single buffered']
    #allocation12 [shape = 's32[1]{0}', space=sflag, size = 0x4, scoped, tag = 'scoped memory for _decoder_forward.1']
    %20 = vsyncpa [#allocation3], 0
    %21 = vsyncpa [#allocation6], 0
    %22 = vsyncpa [#allocation9], 0
    %23 = vsyncpa [#allocation4], 0
    %24 = vsyncpa [#allocation12], 0
    // Predicated region
    $region2: #{_decoder_forward.1} parent=1 // pred_check
      _
    $region3: #{_decoder_forward.1} parent=1 // pred_check_branch
      %26 = sbr.rel (0) target = $region5
    $region4: #{_decoder_forward.1} parent=1 // pred_region
      _
    $region5: #{_decoder_forward.1} parent=1 // pred_fallthru
      _
    // Predicated region
    $region6: #{_decoder_forward.1} parent=1 // pred_check
      _
    $region7: #{_decoder_forward.1} parent=1 // pred_check_branch
      %28 = sbr.rel (0) target = $region9
    $region8: #{_decoder_forward.1} parent=1 // pred_region
      _
    $region9: #{_decoder_forward.1} parent=1 // pred_fallthru
      _
    // Predicated region
    $region10: #{_decoder_forward.1} parent=1 // pred_check
      _
    $region11: #{_decoder_forward.1} parent=1 // pred_check_branch
      %30 = sbr.rel (0) target = $region13
    $region12: #{_decoder_forward.1} parent=1 // pred_region
      %s32 = ssub.s32 32, 32
      %33 = vsyncadd [#allocation3], %s32
      %s35 = sshll.u32 [#allocation2], 4
      %s36 = int_to_ptr.vmem [resolvable:$true] %s35
      %38 = dma.hbm_to_vmem [thread:$0]  %s2, 32, %s36, [#allocation3]
    $region13: #{_decoder_forward.1} parent=1 // pred_fallthru
      _
    // Predicated region
    $region14: #{_decoder_forward.1} parent=1 // pred_check
      _
    $region15: #{_decoder_forward.1} parent=1 // pred_check_branch
      %40 = sbr.rel (0) target = $region17
    $region16: #{_decoder_forward.1} parent=1 // pred_region
      _
    $region17: #{_decoder_forward.1} parent=1 // pred_fallthru
      _
    // Predicated region
    $region18: #{_decoder_forward.1} parent=1 // pred_check
      _
    $region19: #{_decoder_forward.1} parent=1 // pred_check_branch
      %42 = sbr.rel (0) target = $region21
    $region20: #{_decoder_forward.1} parent=1 // pred_region
      _
    $region21: #{_decoder_forward.1} parent=1 // pred_fallthru
      _
    // Predicated region
    $region22: #{_decoder_forward.1} parent=1 // pred_check
      _
    $region23: #{_decoder_forward.1} parent=1 // pred_check_branch
      %44 = sbr.rel (0) target = $region25
    $region24: #{_decoder_forward.1} parent=1 // pred_region
      _
    $region25: #{_decoder_forward.1} parent=1 // pred_fallthru
      _
    // Predicated region
    $region26: #{_decoder_forward.1} parent=1 // pred_check
      _
    $region27: #{_decoder_forward.1} parent=1 // pred_check_branch
      %46 = sbr.rel (0) target = $region29
    $region28: #{_decoder_forward.1} parent=1 // pred_region
      _
    $region29: #{_decoder_forward.1} parent=1 // pred_fallthru
      _
    // Predicated region
    $region30: #{_decoder_forward.1} parent=1 // pred_check
      _
    $region31: #{_decoder_forward.1} parent=1 // pred_check_branch
      %48 = sbr.rel (0) target = $region33
    $region32: #{_decoder_forward.1} parent=1 // pred_region
      _
    $region33: #{_decoder_forward.1} parent=1 // pred_fallthru
      _
    // Predicated region
    $region34: #{_decoder_forward.1} parent=1 // pred_check
      _
    $region35: #{_decoder_forward.1} parent=1 // pred_check_branch
      %50 = sbr.rel (0) target = $region37
    $region36: #{_decoder_forward.1} parent=1 // pred_region
      _
    $region37: #{_decoder_forward.1} parent=1 // pred_fallthru
      _
    // Predicated region
    $region38: #{_decoder_forward.1} parent=1 // pred_check
      _
    $region39: #{_decoder_forward.1} parent=1 // pred_check_branch
      %52 = sbr.rel (0) target = $region41
    $region40: #{_decoder_forward.1} parent=1 // pred_region
      %s54 = ssub.s32 256, 256
      %55 = vsyncadd [#allocation6], %s54
      %s56 = sshll.u32 [#allocation5], 4
      %s57 = int_to_ptr.vmem [resolvable:$true] %s56
      %62 = dma.hbm_to_vmem [thread:$0]  %s9, 256, %s57, [#allocation6], 64, 64, 4
    $region41: #{_decoder_forward.1} parent=1 // pred_fallthru
      _
    // Predicated region
    $region42: #{_decoder_forward.1} parent=1 // pred_check
      _
    $region43: #{_decoder_forward.1} parent=1 // pred_check_branch
      %64 = sbr.rel (0) target = $region45
    $region44: #{_decoder_forward.1} parent=1 // pred_region
      %s66 = ssub.s32 256, 256
      %67 = vsyncadd [#allocation6], %s66
      %s68 = sshll.u32 [#allocation7], 4
      %s69 = int_to_ptr.vmem [resolvable:$true] %s68
      %74 = dma.hbm_to_vmem [thread:$0]  %s10, 256, %s69, [#allocation6], 64, 64, 4
    $region45: #{_decoder_forward.1} parent=1 // pred_fallthru
      _
    // Predicated region
    $region46: #{_decoder_forward.1} parent=1 // pred_check
      _
    $region47: #{_decoder_forward.1} parent=1 // pred_check_branch
      %76 = sbr.rel (0) target = $region49
    $region48: #{_decoder_forward.1} parent=1 // pred_region
      %s78 = ssub.s32 256, 256
      %79 = vsyncadd [#allocation9], %s78
      %s80 = sshll.u32 [#allocation8], 4
      %s81 = int_to_ptr.vmem [resolvable:$true] %s80
      %86 = dma.hbm_to_vmem [thread:$0]  %s11, 256, %s81, [#allocation9], 64, 64, 4
    $region49: #{_decoder_forward.1} parent=1 // pred_fallthru
      _
    // Predicated region
    $region50: #{_decoder_forward.1} parent=1 // pred_check
      _
    $region51: #{_decoder_forward.1} parent=1 // pred_check_branch
      %88 = sbr.rel (0) target = $region53
    $region52: #{_decoder_forward.1} parent=1 // pred_region
      _
    $region53: #{_decoder_forward.1} parent=1 // pred_fallthru
      _
    // Predicated region
    $region54: #{_decoder_forward.1} parent=1 // pred_check
      _
    $region55: #{_decoder_forward.1} parent=1 // pred_check_branch
      %90 = sbr.rel (0) target = $region57
    $region56: #{_decoder_forward.1} parent=1 // pred_region
      %91 = dma.done [#allocation3], 32
    $region57: #{_decoder_forward.1} parent=1 // pred_fallthru
      _
    // Predicated region
    $region58: #{_decoder_forward.1} parent=1 // pred_check
      _
    $region59: #{_decoder_forward.1} parent=1 // pred_check_branch
      %93 = sbr.rel (0) target = $region61
    $region60: #{_decoder_forward.1} parent=1 // pred_region
      %94 = dma.done [#allocation6], 256
    $region61: #{_decoder_forward.1} parent=1 // pred_fallthru
      _
    // Predicated region
    $region62: #{_decoder_forward.1} parent=1 // pred_check
      _
    $region63: #{_decoder_forward.1} parent=1 // pred_check_branch
      %96 = sbr.rel (0) target = $region65
    $region64: #{_decoder_forward.1} parent=1 // pred_region
      %97 = dma.done [#allocation6], 256
    $region65: #{_decoder_forward.1} parent=1 // pred_fallthru
      _
    // Predicated region
    $region66: #{_decoder_forward.1} parent=1 // pred_check
      _
    $region67: #{_decoder_forward.1} parent=1 // pred_check_branch
      %99 = sbr.rel (0) target = $region69
    $region68: #{_decoder_forward.1} parent=1 // pred_region
      %100 = dma.done [#allocation9], 256
    $region69: #{_decoder_forward.1} parent=1 // pred_fallthru
      _
    %v102 = vlaneseq
    %v103 = vand.u32 %v102, 127
    %v104 = vld [vmem:[%s0] sm:$0x3]
    %105 = vset.pattern.permute.xlu0 0
    %106 = vperm.xlu0 %105, %v104
    %v107 = vpop.permute.xlu0 %106
    %vm108 = vcmp.eq.s32.totalorder %v103, %v107
    %v109 = vsel %vm108, 1.0, 0.0
    %v110 = vpack.c.bf16 %v109, %v109
    %v111 = vld [vmem:[%s1] sm:$0xf]
    %v112 = vld [vmem:[%s1 + $0x4] sm:$0xf]
    %v113 = vld [vmem:[%s1 + $0x8] sm:$0xf]
    %v114 = vld [vmem:[%s1 + $0xc] sm:$0xf]
    %v115 = vld [vmem:[%s1 + $0x10] sm:$0xf]
    %v116 = vld [vmem:[%s1 + $0x14] sm:$0xf]
    %v117 = vld [vmem:[%s1 + $0x18] sm:$0xf]
    %v118 = vld [vmem:[%s1 + $0x1c] sm:$0xf]
    %v127 = vunpack.c.l.b16 %v111
    %v128 = vunpack.c.l.b16 %v112
    %v129 = vunpack.c.l.b16 %v113
    %v130 = vunpack.c.l.b16 %v114
    %v131 = vunpack.c.l.b16 %v115
    %v132 = vunpack.c.l.b16 %v116
    %v133 = vunpack.c.l.b16 %v117
    %v134 = vunpack.c.l.b16 %v118
    %v135 = vpack.c.b16 %v128, %v127
    %v136 = vpack.c.b16 %v130, %v129
    %v137 = vpack.c.b16 %v132, %v131
    %v138 = vpack.c.b16 %v134, %v133
    %vm143 = vcmask 523264
    %v145 = vsel %vm143, %v110, 0
    %147 = vmatprep.subr.bf16.mxu0 0
    %148 = vmatpush1.bf16.msra.mxu0 %v135
    %149 = vmatprep.subr.bf16.mxu0 0
    %150 = vmatpush1.bf16.msra.mxu0 %v136
    %151 = vmatprep.subr.bf16.mxu0 0
    %152 = vmatpush1.bf16.msra.mxu0 %v137
    %153 = vmatprep.subr.bf16.mxu0 0
    %154 = vmatpush1.bf16.msra.mxu0 %v138
    %155 = vmatprep.subr.bf16.mxu0 0
    %156 = vmatpush1.bf16.msra.mxu0 0
    %157 = vmatprep.subr.bf16.mxu0 0
    %158 = vmatpush1.bf16.msra.mxu0 0
    %159 = vmatprep.subr.bf16.mxu0 0
    %160 = vmatpush1.bf16.msra.mxu0 0
    %161 = vmatprep.subr.bf16.mxu0 0
    %162 = vmatpush1.bf16.msra.mxu0 0
    %163 = vmatprep.subr.bf16.mxu0 0
    %164 = vmatpush1.bf16.msra.mxu0 0
    %165 = vmatprep.subr.bf16.mxu0 0
    %166 = vmatpush1.bf16.msra.mxu0 0
    %167 = vmatprep.subr.bf16.mxu0 0
    %168 = vmatpush1.bf16.msra.mxu0 0
    %169 = vmatprep.subr.bf16.mxu0 0
    %170 = vmatpush1.bf16.msra.mxu0 0
    %171 = vmatprep.subr.bf16.mxu0 0
    %172 = vmatpush1.bf16.msra.mxu0 0
    %173 = vmatprep.subr.bf16.mxu0 0
    %174 = vmatpush1.bf16.msra.mxu0 0
    %175 = vmatprep.subr.bf16.mxu0 0
    %176 = vmatpush1.bf16.msra.mxu0 0
    %177 = vmatprep.subr.bf16.mxu0 0
    %178 = vmatpush1.bf16.msra.mxu0 0
    %179 = vmatprep.mubr.bf16.mxu0 0
    %180 = vmatmul.mubr.bf16.gmra.mrb[0].mxu0 %v145
    %v181 = vpop.f32.mrb[0].mxu0
    %v182 = vadd.f32 0.0, %v181
    %v183 = vpop.f32.mrb[0].mxu0
    %v184 = vpop.f32.mrb[0].mxu0
    %v185 = vpop.f32.mrb[0].mxu0
    %186 = vdwg.mxu0
    %v187 = vpack.c.bf16 %v182, %v182
    %v188 = vld [vmem:[#allocation2] sm:$0x3]
    %v189 = vld [vmem:[%s3] sm:$0x3]
    %v190 = vpack.c.bf16 %v188, %v188
    %v191 = vpack.c.bf16 %v189, %v189
    %v192 = vld [vmem:[%s4] sm:$0xf]
    %v193 = vld [vmem:[%s4 + $0x4] sm:$0xf]
    %v194 = vld [vmem:[%s4 + $0x8] sm:$0xf]
    %v195 = vld [vmem:[%s4 + $0xc] sm:$0xf]
    %v196 = vld [vmem:[%s5] sm:$0xf]
    %v197 = vld [vmem:[%s5 + $0x4] sm:$0xf]
    %v198 = vld [vmem:[%s5 + $0x8] sm:$0xf]
    %v199 = vld [vmem:[%s5 + $0xc] sm:$0xf]
    %v204 = vunpack.c.l.b16 %v196
    %v205 = vunpack.c.l.b16 %v197
    %v206 = vunpack.c.l.b16 %v198
    %v207 = vunpack.c.l.b16 %v199
    %v208 = vpack.c.b16 %v205, %v204
    %v209 = vpack.c.b16 %v207, %v206
    %vm212 = vcmask 261120
    %v214 = vsel %vm212, %v191, 0
    %216 = vmatprep.subr.bf16.mxu0 0
    %217 = vmatpush1.bf16.msra.mxu0 %v208
    %218 = vmatprep.subr.bf16.mxu0 0
    %219 = vmatpush1.bf16.msra.mxu0 %v209
    %220 = vmatprep.subr.bf16.mxu0 0
    %221 = vmatpush1.bf16.msra.mxu0 0
    %222 = vmatprep.subr.bf16.mxu0 0
    %223 = vmatpush1.bf16.msra.mxu0 0
    %224 = vmatprep.subr.bf16.mxu0 0
    %225 = vmatpush1.bf16.msra.mxu0 0
    %226 = vmatprep.subr.bf16.mxu0 0
    %227 = vmatpush1.bf16.msra.mxu0 0
    %228 = vmatprep.subr.bf16.mxu0 0
    %229 = vmatpush1.bf16.msra.mxu0 0
    %230 = vmatprep.subr.bf16.mxu0 0
    %231 = vmatpush1.bf16.msra.mxu0 0
    %232 = vmatprep.subr.bf16.mxu0 0
    %233 = vmatpush1.bf16.msra.mxu0 0
    %234 = vmatprep.subr.bf16.mxu0 0
    %235 = vmatpush1.bf16.msra.mxu0 0
    %236 = vmatprep.subr.bf16.mxu0 0
    %237 = vmatpush1.bf16.msra.mxu0 0
    %238 = vmatprep.subr.bf16.mxu0 0
    %239 = vmatpush1.bf16.msra.mxu0 0
    %240 = vmatprep.subr.bf16.mxu0 0
    %241 = vmatpush1.bf16.msra.mxu0 0
    %242 = vmatprep.subr.bf16.mxu0 0
    %243 = vmatpush1.bf16.msra.mxu0 0
    %244 = vmatprep.subr.bf16.mxu0 0
    %245 = vmatpush1.bf16.msra.mxu0 0
    %246 = vmatprep.subr.bf16.mxu0 0
    %247 = vmatpush1.bf16.msra.mxu0 0
    %248 = vmatprep.mubr.bf16.mxu0 0
    %249 = vmatmul.mubr.bf16.gmra.mrb[0].mxu0 %v214
    %v250 = vpop.f32.mrb[0].mxu0
    %v251 = vadd.f32 0.0, %v250
    %v252 = vpop.f32.mrb[0].mxu0
    %v253 = vpop.f32.mrb[0].mxu0
    %v254 = vpop.f32.mrb[0].mxu0
    %255 = vdwg.mxu0
    %v260 = vunpack.c.l.b16 %v192
    %v261 = vunpack.c.l.b16 %v193
    %v262 = vunpack.c.l.b16 %v194
    %v263 = vunpack.c.l.b16 %v195
    %v264 = vpack.c.b16 %v261, %v260
    %v265 = vpack.c.b16 %v263, %v262
    %v269 = vsel %vm212, %v187, 0
    %271 = vmatprep.subr.bf16.mxu0 0
    %272 = vmatpush1.bf16.msra.mxu0 %v264
    %273 = vmatprep.subr.bf16.mxu0 0
    %274 = vmatpush1.bf16.msra.mxu0 %v265
    %275 = vmatprep.subr.bf16.mxu0 0
    %276 = vmatpush1.bf16.msra.mxu0 0
    %277 = vmatprep.subr.bf16.mxu0 0
    %278 = vmatpush1.bf16.msra.mxu0 0
    %279 = vmatprep.subr.bf16.mxu0 0
    %280 = vmatpush1.bf16.msra.mxu0 0
    %281 = vmatprep.subr.bf16.mxu0 0
    %282 = vmatpush1.bf16.msra.mxu0 0
    %283 = vmatprep.subr.bf16.mxu0 0
    %284 = vmatpush1.bf16.msra.mxu0 0
    %285 = vmatprep.subr.bf16.mxu0 0
    %286 = vmatpush1.bf16.msra.mxu0 0
    %287 = vmatprep.subr.bf16.mxu0 0
    %288 = vmatpush1.bf16.msra.mxu0 0
    %289 = vmatprep.subr.bf16.mxu0 0
    %290 = vmatpush1.bf16.msra.mxu0 0
    %291 = vmatprep.subr.bf16.mxu0 0
    %292 = vmatpush1.bf16.msra.mxu0 0
    %293 = vmatprep.subr.bf16.mxu0 0
    %294 = vmatpush1.bf16.msra.mxu0 0
    %295 = vmatprep.subr.bf16.mxu0 0
    %296 = vmatpush1.bf16.msra.mxu0 0
    %297 = vmatprep.subr.bf16.mxu0 0
    %298 = vmatpush1.bf16.msra.mxu0 0
    %299 = vmatprep.subr.bf16.mxu0 0
    %300 = vmatpush1.bf16.msra.mxu0 0
    %301 = vmatprep.subr.bf16.mxu0 0
    %302 = vmatpush1.bf16.msra.mxu0 0
    %303 = vmatprep.mubr.bf16.mxu0 0
    %304 = vmatmul.mubr.bf16.gmra.mrb[0].mxu0 %v269
    %v305 = vpop.f32.mrb[0].mxu0
    %v306 = vadd.f32 %v251, %v305
    %v307 = vpop.f32.mrb[0].mxu0
    %v308 = vpop.f32.mrb[0].mxu0
    %v309 = vpop.f32.mrb[0].mxu0
    %310 = vdwg.mxu0
    %v311 = vld [vmem:[%s6] sm:$0x1]
    %v313 = vlaneseq
    %v314 = vshrl.u32 %v313, 7
    %v315 = vsub.s32 0, %v314
    %v316 = vrot.slane %v311, %v315
    %v318 = vadd.f32 %v306, %v316
    %v319 = vld [vmem:[%s7] sm:$0xf]
    %v320 = vld [vmem:[%s7 + $0x4] sm:$0xf]
    %v321 = vld [vmem:[%s7 + $0x8] sm:$0xf]
    %v322 = vld [vmem:[%s7 + $0xc] sm:$0xf]
    %v323 = vld [vmem:[%s8] sm:$0x1]
    %v325 = vlaneseq
    %v326 = vshrl.u32 %v325, 7
    %v327 = vsub.s32 0, %v326
    %v328 = vrot.slane %v323, %v327
    %v334 = vunpack.c.l.b16 %v319
    %v335 = vunpack.c.l.b16 %v320
    %v336 = vunpack.c.l.b16 %v321
    %v337 = vunpack.c.l.b16 %v322
    %v338 = vpack.c.b16 %v335, %v334
    %v339 = vpack.c.b16 %v337, %v336
    %v343 = vsel %vm212, %v190, 0
    %345 = vmatprep.subr.bf16.mxu0 0
    %346 = vmatpush1.bf16.msra.mxu0 %v338
    %347 = vmatprep.subr.bf16.mxu0 0
    %348 = vmatpush1.bf16.msra.mxu0 %v339
    %349 = vmatprep.subr.bf16.mxu0 0
    %350 = vmatpush1.bf16.msra.mxu0 0
    %351 = vmatprep.subr.bf16.mxu0 0
    %352 = vmatpush1.bf16.msra.mxu0 0
    %353 = vmatprep.subr.bf16.mxu0 0
    %354 = vmatpush1.bf16.msra.mxu0 0
    %355 = vmatprep.subr.bf16.mxu0 0
    %356 = vmatpush1.bf16.msra.mxu0 0
    %357 = vmatprep.subr.bf16.mxu0 0
    %358 = vmatpush1.bf16.msra.mxu0 0
    %359 = vmatprep.subr.bf16.mxu0 0
    %360 = vmatpush1.bf16.msra.mxu0 0
    %361 = vmatprep.subr.bf16.mxu0 0
    %362 = vmatpush1.bf16.msra.mxu0 0
    %363 = vmatprep.subr.bf16.mxu0 0
    %364 = vmatpush1.bf16.msra.mxu0 0
    %365 = vmatprep.subr.bf16.mxu0 0
    %366 = vmatpush1.bf16.msra.mxu0 0
    %367 = vmatprep.subr.bf16.mxu0 0
    %368 = vmatpush1.bf16.msra.mxu0 0
    %369 = vmatprep.subr.bf16.mxu0 0
    %370 = vmatpush1.bf16.msra.mxu0 0
    %371 = vmatprep.subr.bf16.mxu0 0
    %372 = vmatpush1.bf16.msra.mxu0 0
    %373 = vmatprep.subr.bf16.mxu0 0
    %374 = vmatpush1.bf16.msra.mxu0 0
    %375 = vmatprep.subr.bf16.mxu0 0
    %376 = vmatpush1.bf16.msra.mxu0 0
    %377 = vmatprep.mubr.bf16.mxu0 0
    %378 = vmatmul.mubr.bf16.gmra.mrb[0].mxu0 %v343
    %v379 = vpop.f32.mrb[0].mxu0
    %v380 = vadd.f32 %v328, %v379
    %v381 = vpop.f32.mrb[0].mxu0
    %v382 = vpop.f32.mrb[0].mxu0
    %v383 = vpop.f32.mrb[0].mxu0
    %384 = vdwg.mxu0
    %v385 = vadd.f32 %v318, %v380
    %v386 = vxor.u32 %v385, 2147483648
    %v387 = vmul.f32 %v386, 1.442695
    %v388 = vpow.pop %v387
    %v389 = vadd.f32 %v388, 1.0
    %v390 = vrcp.pop %v389
    %v391 = vmul.f32 1.0, %v390
    %393 = vrot.lane.b32.xlu0 %v380, 64
    %v394 = vpop.permute.xlu0 %393
    %v396 = vmul.f32 %v391, %v394
    %398 = vrot.lane.b32.xlu0 %v396, 64
    %v399 = vpop.permute.xlu0 %398
    %v401 = vadd.f32 %v318, %v399
    %v402 = vtanh.pop %v401
    %v403 = vsub.f32 1.0, %v391
    %405 = vrot.lane.b32.xlu0 %v402, 96
    %v406 = vpop.permute.xlu0 %405
    %v408 = vmul.f32 %v403, %v406
    %410 = vrot.lane.b32.xlu0 %v188, 32
    %v411 = vpop.permute.xlu0 %410
    %v413 = vmul.f32 %v391, %v411
    %v414 = vadd.f32 %v408, %v413
    %416 = vrot.lane.b32.xlu0 %v414, 96
    %v417 = vpop.permute.xlu0 %416
    %vm419 = vcmask 254976
    %420 = vst.msk [vmem:[#allocation11] sm:$0x3] %vm419, %v417
    %v421 = vld [vmem:[#allocation5] sm:$0xf]
    %v422 = vld [vmem:[#allocation5 + $0x4] sm:$0xf]
    %v423 = vld [vmem:[#allocation5 + $0x8] sm:$0xf]
    %v424 = vld [vmem:[#allocation5 + $0xc] sm:$0xf]
    %v425 = vpack.c.bf16 %v414, %v414
    %v426 = vld [vmem:[#allocation7] sm:$0xf]
    %v427 = vld [vmem:[#allocation7 + $0x4] sm:$0xf]
    %v428 = vld [vmem:[#allocation7 + $0x8] sm:$0xf]
    %v429 = vld [vmem:[#allocation7 + $0xc] sm:$0xf]
    %431 = vrot.lane.b32.xlu0 %v425, 96
    %v432 = vpop.permute.xlu0 %431
    %v437 = vunpack.c.l.b16 %v426
    %v438 = vunpack.c.l.b16 %v427
    %v439 = vunpack.c.l.b16 %v428
    %v440 = vunpack.c.l.b16 %v429
    %v441 = vpack.c.b16 %v438, %v437
    %v442 = vpack.c.b16 %v440, %v439
    %v446 = vsel %vm212, %v432, 0
    %448 = vmatprep.subr.bf16.mxu0 0
    %449 = vmatpush1.bf16.msra.mxu0 %v441
    %450 = vmatprep.subr.bf16.mxu0 0
    %451 = vmatpush1.bf16.msra.mxu0 %v442
    %452 = vmatprep.subr.bf16.mxu0 0
    %453 = vmatpush1.bf16.msra.mxu0 0
    %454 = vmatprep.subr.bf16.mxu0 0
    %455 = vmatpush1.bf16.msra.mxu0 0
    %456 = vmatprep.subr.bf16.mxu0 0
    %457 = vmatpush1.bf16.msra.mxu0 0
    %458 = vmatprep.subr.bf16.mxu0 0
    %459 = vmatpush1.bf16.msra.mxu0 0
    %460 = vmatprep.subr.bf16.mxu0 0
    %461 = vmatpush1.bf16.msra.mxu0 0
    %462 = vmatprep.subr.bf16.mxu0 0
    %463 = vmatpush1.bf16.msra.mxu0 0
    %464 = vmatprep.subr.bf16.mxu0 0
    %465 = vmatpush1.bf16.msra.mxu0 0
    %466 = vmatprep.subr.bf16.mxu0 0
    %467 = vmatpush1.bf16.msra.mxu0 0
    %468 = vmatprep.subr.bf16.mxu0 0
    %469 = vmatpush1.bf16.msra.mxu0 0
    %470 = vmatprep.subr.bf16.mxu0 0
    %471 = vmatpush1.bf16.msra.mxu0 0
    %472 = vmatprep.subr.bf16.mxu0 0
    %473 = vmatpush1.bf16.msra.mxu0 0
    %474 = vmatprep.subr.bf16.mxu0 0
    %475 = vmatpush1.bf16.msra.mxu0 0
    %476 = vmatprep.subr.bf16.mxu0 0
    %477 = vmatpush1.bf16.msra.mxu0 0
    %478 = vmatprep.subr.bf16.mxu0 0
    %479 = vmatpush1.bf16.msra.mxu0 0
    %480 = vmatprep.mubr.bf16.mxu0 0
    %481 = vmatmul.mubr.bf16.gmra.mrb[0].mxu0 %v446
    %v482 = vpop.f32.mrb[0].mxu0
    %v483 = vadd.f32 0.0, %v482
    %v484 = vpop.f32.mrb[0].mxu0
    %v485 = vpop.f32.mrb[0].mxu0
    %v486 = vpop.f32.mrb[0].mxu0
    %487 = vdwg.mxu0
    %v492 = vunpack.c.l.b16 %v421
    %v493 = vunpack.c.l.b16 %v422
    %v494 = vunpack.c.l.b16 %v423
    %v495 = vunpack.c.l.b16 %v424
    %v496 = vpack.c.b16 %v493, %v492
    %v497 = vpack.c.b16 %v495, %v494
    %500 = vmatprep.subr.bf16.mxu0 0
    %501 = vmatpush1.bf16.msra.mxu0 %v496
    %502 = vmatprep.subr.bf16.mxu0 0
    %503 = vmatpush1.bf16.msra.mxu0 %v497
    %504 = vmatprep.subr.bf16.mxu0 0
    %505 = vmatpush1.bf16.msra.mxu0 0
    %506 = vmatprep.subr.bf16.mxu0 0
    %507 = vmatpush1.bf16.msra.mxu0 0
    %508 = vmatprep.subr.bf16.mxu0 0
    %509 = vmatpush1.bf16.msra.mxu0 0
    %510 = vmatprep.subr.bf16.mxu0 0
    %511 = vmatpush1.bf16.msra.mxu0 0
    %512 = vmatprep.subr.bf16.mxu0 0
    %513 = vmatpush1.bf16.msra.mxu0 0
    %514 = vmatprep.subr.bf16.mxu0 0
    %515 = vmatpush1.bf16.msra.mxu0 0
    %516 = vmatprep.subr.bf16.mxu0 0
    %517 = vmatpush1.bf16.msra.mxu0 0
    %518 = vmatprep.subr.bf16.mxu0 0
    %519 = vmatpush1.bf16.msra.mxu0 0
    %520 = vmatprep.subr.bf16.mxu0 0
    %521 = vmatpush1.bf16.msra.mxu0 0
    %522 = vmatprep.subr.bf16.mxu0 0
    %523 = vmatpush1.bf16.msra.mxu0 0
    %524 = vmatprep.subr.bf16.mxu0 0
    %525 = vmatpush1.bf16.msra.mxu0 0
    %526 = vmatprep.subr.bf16.mxu0 0
    %527 = vmatpush1.bf16.msra.mxu0 0
    %528 = vmatprep.subr.bf16.mxu0 0
    %529 = vmatpush1.bf16.msra.mxu0 0
    %530 = vmatprep.subr.bf16.mxu0 0
    %531 = vmatpush1.bf16.msra.mxu0 0
    %532 = vmatprep.mubr.bf16.mxu0 0
    %533 = vmatmul.mubr.bf16.gmra.mrb[0].mxu0 %v269
    %v534 = vpop.f32.mrb[0].mxu0
    %v535 = vadd.f32 %v483, %v534
    %v536 = vpop.f32.mrb[0].mxu0
    %v537 = vpop.f32.mrb[0].mxu0
    %v538 = vpop.f32.mrb[0].mxu0
    %539 = vdwg.mxu0
    %v540 = vld [vmem:[#allocation8] sm:$0xf]
    %v541 = vld [vmem:[#allocation8 + $0x4] sm:$0xf]
    %v542 = vld [vmem:[#allocation8 + $0x8] sm:$0xf]
    %v543 = vld [vmem:[#allocation8 + $0xc] sm:$0xf]
    %v548 = vunpack.c.l.b16 %v540
    %v549 = vunpack.c.l.b16 %v541
    %v550 = vunpack.c.l.b16 %v542
    %v551 = vunpack.c.l.b16 %v543
    %v552 = vpack.c.b16 %v549, %v548
    %v553 = vpack.c.b16 %v551, %v550
    %556 = vmatprep.subr.bf16.mxu0 0
    %557 = vmatpush1.bf16.msra.mxu0 %v552
    %558 = vmatprep.subr.bf16.mxu0 0
    %559 = vmatpush1.bf16.msra.mxu0 %v553
    %560 = vmatprep.subr.bf16.mxu0 0
    %561 = vmatpush1.bf16.msra.mxu0 0
    %562 = vmatprep.subr.bf16.mxu0 0
    %563 = vmatpush1.bf16.msra.mxu0 0
    %564 = vmatprep.subr.bf16.mxu0 0
    %565 = vmatpush1.bf16.msra.mxu0 0
    %566 = vmatprep.subr.bf16.mxu0 0
    %567 = vmatpush1.bf16.msra.mxu0 0
    %568 = vmatprep.subr.bf16.mxu0 0
    %569 = vmatpush1.bf16.msra.mxu0 0
    %570 = vmatprep.subr.bf16.mxu0 0
    %571 = vmatpush1.bf16.msra.mxu0 0
    %572 = vmatprep.subr.bf16.mxu0 0
    %573 = vmatpush1.bf16.msra.mxu0 0
    %574 = vmatprep.subr.bf16.mxu0 0
    %575 = vmatpush1.bf16.msra.mxu0 0
    %576 = vmatprep.subr.bf16.mxu0 0
    %577 = vmatpush1.bf16.msra.mxu0 0
    %578 = vmatprep.subr.bf16.mxu0 0
    %579 = vmatpush1.bf16.msra.mxu0 0
    %580 = vmatprep.subr.bf16.mxu0 0
    %581 = vmatpush1.bf16.msra.mxu0 0
    %582 = vmatprep.subr.bf16.mxu0 0
    %583 = vmatpush1.bf16.msra.mxu0 0
    %584 = vmatprep.subr.bf16.mxu0 0
    %585 = vmatpush1.bf16.msra.mxu0 0
    %586 = vmatprep.subr.bf16.mxu0 0
    %587 = vmatpush1.bf16.msra.mxu0 0
    %588 = vmatprep.mubr.bf16.mxu0 0
    %589 = vmatmul.mubr.bf16.gmra.mrb[0].mxu0 %v214
    %v590 = vpop.f32.mrb[0].mxu0
    %v591 = vadd.f32 0.0, %v590
    %v592 = vpop.f32.mrb[0].mxu0
    %v593 = vpop.f32.mrb[0].mxu0
    %v594 = vpop.f32.mrb[0].mxu0
    %595 = vdwg.mxu0
    %v596 = vadd.f32 %v535, %v591
    %v597 = vld [vmem:[%s12] sm:$0x1]
    %v599 = vlaneseq
    %v600 = vshrl.u32 %v599, 7
    %v601 = vsub.s32 0, %v600
    %v602 = vrot.slane %v597, %v601
    %v604 = vadd.f32 %v596, %v602
    %vm605 = vcmask 517120
    %606 = vst.msk [vmem:[#allocation10] sm:$0x3] %vm605, %v604
    // Predicated region
    $region70: #{_decoder_forward.1} parent=1 // pred_check
      _
    $region71: #{_decoder_forward.1} parent=1 // pred_check_branch
      %608 = sbr.rel (0) target = $region73
    $region72: #{_decoder_forward.1} parent=1 // pred_region
      %s610 = ssub.s32 32, 32
      %611 = vsyncadd [#allocation4], %s610
      %s613 = sshll.u32 [#allocation10], 4
      %s614 = int_to_ptr.vmem [resolvable:$true] %s613
      %616 = dma.vmem_to_hbm [thread:$0]  %s614, 32, %s13, [#allocation4]
    $region73: #{_decoder_forward.1} parent=1 // pred_fallthru
      _
    // Predicated region
    $region74: #{_decoder_forward.1} parent=1 // pred_check
      _
    $region75: #{_decoder_forward.1} parent=1 // pred_check_branch
      %618 = sbr.rel (0) target = $region77
    $region76: #{_decoder_forward.1} parent=1 // pred_region
      %s620 = ssub.s32 32, 32
      %621 = vsyncadd [#allocation12], %s620
      %s623 = sshll.u32 [#allocation11], 4
      %s624 = int_to_ptr.vmem [resolvable:$true] %s623
      %626 = dma.vmem_to_hbm [thread:$0]  %s624, 32, %s14, [#allocation12]
    $region77: #{_decoder_forward.1} parent=1 // pred_fallthru
      _
    // Predicated region
    $region78: #{_decoder_forward.1} parent=1 // pred_check
      _
    $region79: #{_decoder_forward.1} parent=1 // pred_check_branch
      %628 = sbr.rel (0) target = $region81
    $region80: #{_decoder_forward.1} parent=1 // pred_region
      %629 = dma.done [#allocation4], 32
    $region81: #{_decoder_forward.1} parent=1 // pred_fallthru
      _
    // Predicated region
    $region82: #{_decoder_forward.1} parent=1 // pred_check
      _
    $region83: #{_decoder_forward.1} parent=1 // pred_check_branch
      %631 = sbr.rel (0) target = $region85
    $region84: #{_decoder_forward.1} parent=1 // pred_region
      %632 = dma.done [#allocation12], 32
    $region85: #{_decoder_forward.1} parent=1 // pred_fallthru
      _
    %633 = vsyncpa [#allocation3], 1
    %634 = vsyncpa [#allocation6], 1
    %635 = vsyncpa [#allocation9], 1
    %636 = vsyncpa [#allocation4], 1
    %637 = vsyncpa [#allocation12], 1

</llo_original>
